<compile_context>
chip_gen: v5e
topology: v5e:2x2
jax: 0.10.0
libtpu: 0.0.40
codegen_flags: <defaults>
</compile_context>

<pallas_src>
import functools
import math

import jax
import jax.numpy as jnp
from jax.experimental import pallas as pl
from jax.experimental.pallas import tpu as pltpu


def _round_up(x, m):
    return ((x + m - 1) // m) * m


def _fused_lstm_kernel(tok_ref, emb_ref, h0_ref, c0_ref, w_ref, b_ref,
                       out_ref, xh_ref, *, n_layers, hidden_size, emb_size):
    """Fused embedding-gather + n_layers LSTM cell steps (batch=1, seq=1).

    tok_ref : (1,)               SMEM scalar-prefetch token id (gather done by index_map)
    emb_ref : (1, 1, E)          gathered embedding row
    h0_ref  : (L, 1, H)          initial hidden states
    c0_ref  : (L, 1, H)          initial cell states
    w_ref   : (L, K_pad, 4H)     packed [W_ih^T (padded) ; W_hh^T ; 0] per layer
    b_ref   : (L, 1, 4H)         combined bias b_ih + b_hh
    out_ref : (1, OUT_W)         lane-dense slab [h_0|c_0|h_1|c_1|...|pad]
    xh_ref  : (1, K_pad) VMEM    scratch carrying [x_pad | h | 0] per layer
    """
    del tok_ref  # the gather is expressed in the embedding BlockSpec index_map
    H, E = hidden_size, emb_size

    out_ref[...] = jnp.zeros_like(out_ref)   # also initializes the pad lanes
    xh_ref[...] = jnp.zeros_like(xh_ref)     # zero padding / unused input lanes
    xh_ref[:, 0:E] = emb_ref[0]              # layer-0 input = embedding row

    for l in range(n_layers):                # small static L: unrolled at trace time
        h_prev = h0_ref[l]                   # (1, H)
        c_prev = c0_ref[l]                   # (1, H)
        xh_ref[:, E:E + H] = h_prev          # recurrent-input slot

        # gates = [x_pad | h] @ [W_ih^T ; W_hh^T] + (b_ih + b_hh)   -> (1, 4H)
        gates = jnp.dot(xh_ref[...], w_ref[l],
                        preferred_element_type=jnp.float32) + b_ref[l]

        sg = jax.nn.sigmoid(gates)           # one full-vreg sigmoid sweep
        i_g = sg[:, 0 * H:1 * H]
        f_g = sg[:, 1 * H:2 * H]
        o_g = sg[:, 3 * H:4 * H]
        g_g = jnp.tanh(gates[:, 2 * H:3 * H])

        c_new = f_g * c_prev + i_g * g_g
        h_new = o_g * jnp.tanh(c_new)

        out_ref[:, (2 * l) * H:(2 * l + 1) * H] = h_new
        out_ref[:, (2 * l + 1) * H:(2 * l + 2) * H] = c_new

        if l + 1 < n_layers:
            xh_ref[:, 0:H] = h_new           # next layer's input (width H)
            if l == 0:
                # clear the rest of the wide layer-0 input slot once
                xh_ref[:, H:E] = jnp.zeros((1, E - H), jnp.float32)


def lstm_encoder_forward(params, token_id, hidden):
    """Equivalent of LSTMEncoder.forward(input, hidden) with batch=1, seq=1.

    token_id: scalar int index
    hidden:   (h0, c0), each (n_layers, 1, hidden_size)
    returns:  output (1, 1, H), (h_n, c_n) each (n_layers, 1, H)
    """
    h0, c0 = hidden
    emb = params["embedding"]                      # (V, 1, E)
    w = params["w"]                                # (L, K_pad, 4H)
    b = params["b"]                                # (L, 1, 4H)
    L, _, H = h0.shape
    E = emb.shape[-1]
    k_pad = w.shape[1]
    out_w = max(128, _round_up(2 * L * H, 128))

    tok = jnp.asarray(token_id, jnp.int32).reshape(1)

    kernel = functools.partial(_fused_lstm_kernel, n_layers=L,
                               hidden_size=H, emb_size=E)

    slab = pl.pallas_call(
        kernel,
        out_shape=jax.ShapeDtypeStruct((1, out_w), jnp.float32),
        grid_spec=pltpu.PrefetchScalarGridSpec(
            num_scalar_prefetch=1,
            grid=(1,),
            in_specs=[
                # embedding row gather driven by the prefetched token id
                pl.BlockSpec((1, 1, E), lambda i, tok: (tok[0], 0, 0)),
                pl.BlockSpec((L, 1, H), lambda i, tok: (0, 0, 0)),
                pl.BlockSpec((L, 1, H), lambda i, tok: (0, 0, 0)),
                pl.BlockSpec((L, k_pad, 4 * H), lambda i, tok: (0, 0, 0)),
                pl.BlockSpec((L, 1, 4 * H), lambda i, tok: (0, 0, 0)),
            ],
            out_specs=pl.BlockSpec((1, out_w), lambda i, tok: (0, 0)),
            scratch_shapes=[pltpu.VMEM((1, k_pad), jnp.float32)],
        ),
        compiler_params=pltpu.CompilerParams(
            dimension_semantics=("arbitrary",)),
    )(tok, emb, h0, c0, w, b)

    hc = slab[0, :2 * L * H].reshape(L, 2, H)
    h_n = hc[:, 0, :].reshape(L, 1, H)
    c_n = hc[:, 1, :].reshape(L, 1, H)
    output = h_n[L - 1].reshape(1, 1, H)
    return output, (h_n, c_n)


def init_params(key, input_size, embedding_size, hidden_size, n_layers):
    """Synthetic params matching nn.Embedding / nn.LSTM shapes; returns packed
    kernel params and the raw weights (for the pure-JAX reference check)."""
    E, H = embedding_size, hidden_size
    k_pad = _round_up(E + H, 128)
    keys = jax.random.split(key, 1 + 4 * n_layers)

    # nn.Embedding default init: N(0, 1)
    embedding = jax.random.normal(keys[0], (input_size, E), jnp.float32)

    k = 1.0 / math.sqrt(H)  # PyTorch LSTM init: U(-1/sqrt(H), 1/sqrt(H))
    w_stack, b_stack, raw_layers = [], [], []
    for l in range(n_layers):
        d_in = E if l == 0 else H
        kw = keys[1 + 4 * l: 1 + 4 * (l + 1)]
        w_ih = jax.random.uniform(kw[0], (4 * H, d_in), jnp.float32, -k, k)
        w_hh = jax.random.uniform(kw[1], (4 * H, H), jnp.float32, -k, k)
        b_ih = jax.random.uniform(kw[2], (4 * H,), jnp.float32, -k, k)
        b_hh = jax.random.uniform(kw[3], (4 * H,), jnp.float32, -k, k)

        # Packed combined weight: rows [0:d_in] = W_ih^T, rows [E:E+H] = W_hh^T.
        w_cat = jnp.zeros((k_pad, 4 * H), jnp.float32)
        w_cat = w_cat.at[0:d_in, :].set(w_ih.T)
        w_cat = w_cat.at[E:E + H, :].set(w_hh.T)
        w_stack.append(w_cat)
        b_stack.append((b_ih + b_hh).reshape(1, 4 * H))
        raw_layers.append({"w_ih": w_ih, "w_hh": w_hh, "b_ih": b_ih, "b_hh": b_hh})

    params = {
        "embedding": embedding.reshape(input_size, 1, E),   # (V, 1, E) for row gather
        "w": jnp.stack(w_stack, axis=0),                    # (L, K_pad, 4H)
        "b": jnp.stack(b_stack, axis=0),                    # (L, 1, 4H)
    }
    raw = {"embedding": embedding, "layers": raw_layers}
    return params, raw


def lstm_encoder_reference(raw, token_id, hidden):
    """Pure-JAX reference matching PyTorch LSTM eval-mode semantics."""
    h0, c0 = hidden
    H = h0.shape[-1]
    x = raw["embedding"][token_id].reshape(1, -1)
    h_list, c_list = [], []
    for l, lp in enumerate(raw["layers"]):
        gates = (x @ lp["w_ih"].T + h0[l] @ lp["w_hh"].T + lp["b_ih"] + lp["b_hh"])
        i_g = jax.nn.sigmoid(gates[:, 0 * H:1 * H])
        f_g = jax.nn.sigmoid(gates[:, 1 * H:2 * H])
        g_g = jnp.tanh(gates[:, 2 * H:3 * H])
        o_g = jax.nn.sigmoid(gates[:, 3 * H:4 * H])
        c_new = f_g * c0[l] + i_g * g_g
        h_new = o_g * jnp.tanh(c_new)
        x = h_new
        h_list.append(h_new)
        c_list.append(c_new)
    return x.reshape(1, 1, -1), (jnp.stack(h_list, 0), jnp.stack(c_list, 0))


if __name__ == "__main__":
    # Small shapes consistent with the module: single token, batch=1, seq=1.
    input_size = 64          # vocab
    embedding_size = 256     # module global
    hidden_size = 32
    n_layers = 3             # module global

    key = jax.random.PRNGKey(0)
    params, raw = init_params(key, input_size, embedding_size, hidden_size, n_layers)

    token = jnp.array(7, dtype=jnp.int32)
    k_h, k_c = jax.random.split(jax.random.PRNGKey(1))
    h0 = 0.1 * jax.random.normal(k_h, (n_layers, 1, hidden_size), jnp.float32)
    c0 = 0.1 * jax.random.normal(k_c, (n_layers, 1, hidden_size), jnp.float32)

    fwd = jax.jit(lstm_encoder_forward)
    output, (h_n, c_n) = fwd(params, token, (h0, c0))
    jax.block_until_ready((output, h_n, c_n))

    assert output.shape == (1, 1, hidden_size)
    assert h_n.shape == (n_layers, 1, hidden_size)
    assert c_n.shape == (n_layers, 1, hidden_size)

    # Correctness check against the pure-JAX reference.
    out_ref, (h_ref, c_ref) = lstm_encoder_reference(raw, token, (h0, c0))
    assert jnp.allclose(output, out_ref, atol=1e-4, rtol=1e-4)
    assert jnp.allclose(h_n, h_ref, atol=1e-4, rtol=1e-4)
    assert jnp.allclose(c_n, c_ref, atol=1e-4, rtol=1e-4)

    print("KERNEL_OK")
</pallas_src>

<mosaic_0001>
module attributes {stable_mosaic.version = 11 : i64} {
  func.func @_fused_lstm_kernel(%arg0: i32, %arg1: memref<1xi32, #tpu.memory_space<smem>>, %arg2: memref<1x1x256xf32, #tpu.memory_space<vmem>>, %arg3: memref<3x1x32xf32, #tpu.memory_space<vmem>>, %arg4: memref<3x1x32xf32, #tpu.memory_space<vmem>>, %arg5: memref<3x384x128xf32, #tpu.memory_space<vmem>>, %arg6: memref<3x1x128xf32, #tpu.memory_space<vmem>>, %arg7: memref<1x256xf32, #tpu.memory_space<vmem>>, %arg8: memref<1x384xf32, #tpu.memory_space<vmem>>) attributes {dimension_semantics = [#tpu.dimension_semantics<arbitrary>], iteration_bounds = array<i64: 1>, scalar_prefetch = 1 : i64, scratch_operands = 1 : i64, tpu.core_type = #tpu.core_type<tc>, window_params = [{transform_indices = @transform_0, window_bounds = array<i64: 1, 1, 256>}, {pipeline_mode = #tpu.pipeline_mode<synchronous>, transform_indices = @transform_1, window_bounds = array<i64: 3, 1, 32>}, {pipeline_mode = #tpu.pipeline_mode<synchronous>, transform_indices = @transform_2, window_bounds = array<i64: 3, 1, 32>}, {pipeline_mode = #tpu.pipeline_mode<synchronous>, transform_indices = @transform_3, window_bounds = array<i64: 3, 384, 128>}, {pipeline_mode = #tpu.pipeline_mode<synchronous>, transform_indices = @transform_4, window_bounds = array<i64: 3, 1, 128>}, {pipeline_mode = #tpu.pipeline_mode<synchronous>, transform_indices = @transform_5, window_bounds = array<i64: 1, 256>}]} {
    %cst = arith.constant 0.000000e+00 : f32
    %0 = vector.broadcast %cst : f32 to vector<1x256xf32>
    %c0 = arith.constant 0 : index
    %c0_0 = arith.constant 0 : index
    %1 = vector.load %arg7[%c0, %c0_0] : memref<1x256xf32, #tpu.memory_space<vmem>>, vector<1x256xf32>
    tpu.vector_store %arg7[%c0, %c0_0], %0 {strides = array<i32>} : memref<1x256xf32, #tpu.memory_space<vmem>>, vector<1x256xf32>,
    %cst_1 = arith.constant 0.000000e+00 : f32
    %2 = vector.broadcast %cst_1 : f32 to vector<1x384xf32>
    %c0_2 = arith.constant 0 : index
    %c0_3 = arith.constant 0 : index
    %3 = vector.load %arg8[%c0_2, %c0_3] : memref<1x384xf32, #tpu.memory_space<vmem>>, vector<1x384xf32>
    tpu.vector_store %arg8[%c0_2, %c0_3], %2 {strides = array<i32>} : memref<1x384xf32, #tpu.memory_space<vmem>>, vector<1x384xf32>,
    %c0_4 = arith.constant 0 : index
    %c0_5 = arith.constant 0 : index
    %c0_6 = arith.constant 0 : index
    %4 = vector.load %arg2[%c0_4, %c0_5, %c0_6] : memref<1x1x256xf32, #tpu.memory_space<vmem>>, vector<1x1x256xf32>
    %5 = vector.shape_cast %4 : vector<1x1x256xf32> to vector<1x256xf32>
    %c0_7 = arith.constant 0 : index
    %c0_8 = arith.constant 0 : index
    %6 = vector.load %arg8[%c0_7, %c0_8] : memref<1x384xf32, #tpu.memory_space<vmem>>, vector<1x256xf32>
    tpu.vector_store %arg8[%c0_7, %c0_8], %5 {strides = array<i32>} : memref<1x384xf32, #tpu.memory_space<vmem>>, vector<1x256xf32>,
    %c0_9 = arith.constant 0 : index
    %c0_10 = arith.constant 0 : index
    %c0_11 = arith.constant 0 : index
    %7 = vector.load %arg3[%c0_9, %c0_10, %c0_11] : memref<3x1x32xf32, #tpu.memory_space<vmem>>, vector<1x1x32xf32>
    %8 = vector.shape_cast %7 : vector<1x1x32xf32> to vector<1x32xf32>
    %c0_12 = arith.constant 0 : index
    %c0_13 = arith.constant 0 : index
    %c0_14 = arith.constant 0 : index
    %9 = vector.load %arg4[%c0_12, %c0_13, %c0_14] : memref<3x1x32xf32, #tpu.memory_space<vmem>>, vector<1x1x32xf32>
    %10 = vector.shape_cast %9 : vector<1x1x32xf32> to vector<1x32xf32>
    %c0_15 = arith.constant 0 : index
    %c256 = arith.constant 256 : index
    %11 = vector.load %arg8[%c0_15, %c256] : memref<1x384xf32, #tpu.memory_space<vmem>>, vector<1x32xf32>
    tpu.vector_store %arg8[%c0_15, %c256], %8 {strides = array<i32>} : memref<1x384xf32, #tpu.memory_space<vmem>>, vector<1x32xf32>,
    %c0_16 = arith.constant 0 : index
    %c0_17 = arith.constant 0 : index
    %12 = vector.load %arg8[%c0_16, %c0_17] : memref<1x384xf32, #tpu.memory_space<vmem>>, vector<1x384xf32>
    %c0_18 = arith.constant 0 : index
    %c0_19 = arith.constant 0 : index
    %c0_20 = arith.constant 0 : index
    %13 = vector.load %arg5[%c0_18, %c0_19, %c0_20] : memref<3x384x128xf32, #tpu.memory_space<vmem>>, vector<1x384x128xf32>
    %14 = vector.shape_cast %13 : vector<1x384x128xf32> to vector<384x128xf32>
    %cst_21 = arith.constant dense<0.000000e+00> : vector<1x128xf32>
    %15 = tpu.matmul %12, %14, %cst_21 {dimension_numbers = #tpu.dot_dimension_numbers<[1], [0], [0], [1], [0, 0, 1, 1], [], []>} : vector<1x384xf32>, vector<384x128xf32>, vector<1x128xf32> -> vector<1x128xf32>
    %c0_22 = arith.constant 0 : index
    %c0_23 = arith.constant 0 : index
    %c0_24 = arith.constant 0 : index
    %16 = vector.load %arg6[%c0_22, %c0_23, %c0_24] : memref<3x1x128xf32, #tpu.memory_space<vmem>>, vector<1x1x128xf32>
    %17 = vector.shape_cast %16 : vector<1x1x128xf32> to vector<1x128xf32>
    %18 = arith.addf %15, %17 : vector<1x128xf32>
    %19 = arith.negf %18 : vector<1x128xf32>
    %20 = math.exp %19 : vector<1x128xf32>
    %cst_25 = arith.constant 1.000000e+00 : f32
    %21 = vector.broadcast %cst_25 : f32 to vector<1x128xf32>
    %22 = arith.addf %21, %20 : vector<1x128xf32>
    %23 = arith.divf %21, %22 : vector<1x128xf32>
    %24 = vector.extract_strided_slice %23 {offsets = [0, 0], sizes = [1, 32], strides = [1, 1]} : vector<1x128xf32> to vector<1x32xf32>
    %25 = vector.extract_strided_slice %23 {offsets = [0, 32], sizes = [1, 32], strides = [1, 1]} : vector<1x128xf32> to vector<1x32xf32>
    %26 = vector.extract_strided_slice %23 {offsets = [0, 96], sizes = [1, 32], strides = [1, 1]} : vector<1x128xf32> to vector<1x32xf32>
    %27 = vector.extract_strided_slice %18 {offsets = [0, 64], sizes = [1, 32], strides = [1, 1]} : vector<1x128xf32> to vector<1x32xf32>
    %28 = math.tanh %27 : vector<1x32xf32>
    %29 = arith.mulf %25, %10 : vector<1x32xf32>
    %30 = arith.mulf %24, %28 : vector<1x32xf32>
    %31 = arith.addf %29, %30 : vector<1x32xf32>
    %32 = math.tanh %31 : vector<1x32xf32>
    %33 = arith.mulf %26, %32 : vector<1x32xf32>
    %c0_26 = arith.constant 0 : index
    %c0_27 = arith.constant 0 : index
    %34 = vector.load %arg7[%c0_26, %c0_27] : memref<1x256xf32, #tpu.memory_space<vmem>>, vector<1x32xf32>
    tpu.vector_store %arg7[%c0_26, %c0_27], %33 {strides = array<i32>} : memref<1x256xf32, #tpu.memory_space<vmem>>, vector<1x32xf32>,
    %c0_28 = arith.constant 0 : index
    %c32 = arith.constant 32 : index
    %35 = vector.load %arg7[%c0_28, %c32] : memref<1x256xf32, #tpu.memory_space<vmem>>, vector<1x32xf32>
    tpu.vector_store %arg7[%c0_28, %c32], %31 {strides = array<i32>} : memref<1x256xf32, #tpu.memory_space<vmem>>, vector<1x32xf32>,
    %c0_29 = arith.constant 0 : index
    %c0_30 = arith.constant 0 : index
    %36 = vector.load %arg8[%c0_29, %c0_30] : memref<1x384xf32, #tpu.memory_space<vmem>>, vector<1x32xf32>
    tpu.vector_store %arg8[%c0_29, %c0_30], %33 {strides = array<i32>} : memref<1x384xf32, #tpu.memory_space<vmem>>, vector<1x32xf32>,
    %cst_31 = arith.constant 0.000000e+00 : f32
    %37 = vector.broadcast %cst_31 : f32 to vector<1x224xf32>
    %c0_32 = arith.constant 0 : index
    %c32_33 = arith.constant 32 : index
    %38 = vector.load %arg8[%c0_32, %c32_33] : memref<1x384xf32, #tpu.memory_space<vmem>>, vector<1x224xf32>
    tpu.vector_store %arg8[%c0_32, %c32_33], %37 {strides = array<i32>} : memref<1x384xf32, #tpu.memory_space<vmem>>, vector<1x224xf32>,
    %c1 = arith.constant 1 : index
    %c0_34 = arith.constant 0 : index
    %c0_35 = arith.constant 0 : index
    %39 = vector.load %arg3[%c1, %c0_34, %c0_35] : memref<3x1x32xf32, #tpu.memory_space<vmem>>, vector<1x1x32xf32>
    %40 = vector.shape_cast %39 : vector<1x1x32xf32> to vector<1x32xf32>
    %c1_36 = arith.constant 1 : index
    %c0_37 = arith.constant 0 : index
    %c0_38 = arith.constant 0 : index
    %41 = vector.load %arg4[%c1_36, %c0_37, %c0_38] : memref<3x1x32xf32, #tpu.memory_space<vmem>>, vector<1x1x32xf32>
    %42 = vector.shape_cast %41 : vector<1x1x32xf32> to vector<1x32xf32>
    %c0_39 = arith.constant 0 : index
    %c256_40 = arith.constant 256 : index
    %43 = vector.load %arg8[%c0_39, %c256_40] : memref<1x384xf32, #tpu.memory_space<vmem>>, vector<1x32xf32>
    tpu.vector_store %arg8[%c0_39, %c256_40], %40 {strides = array<i32>} : memref<1x384xf32, #tpu.memory_space<vmem>>, vector<1x32xf32>,
    %c0_41 = arith.constant 0 : index
    %c0_42 = arith.constant 0 : index
    %44 = vector.load %arg8[%c0_41, %c0_42] : memref<1x384xf32, #tpu.memory_space<vmem>>, vector<1x384xf32>
    %c1_43 = arith.constant 1 : index
    %c0_44 = arith.constant 0 : index
    %c0_45 = arith.constant 0 : index
    %45 = vector.load %arg5[%c1_43, %c0_44, %c0_45] : memref<3x384x128xf32, #tpu.memory_space<vmem>>, vector<1x384x128xf32>
    %46 = vector.shape_cast %45 : vector<1x384x128xf32> to vector<384x128xf32>
    %cst_46 = arith.constant dense<0.000000e+00> : vector<1x128xf32>
    %47 = tpu.matmul %44, %46, %cst_46 {dimension_numbers = #tpu.dot_dimension_numbers<[1], [0], [0], [1], [0, 0, 1, 1], [], []>} : vector<1x384xf32>, vector<384x128xf32>, vector<1x128xf32> -> vector<1x128xf32>
    %c1_47 = arith.constant 1 : index
    %c0_48 = arith.constant 0 : index
    %c0_49 = arith.constant 0 : index
    %48 = vector.load %arg6[%c1_47, %c0_48, %c0_49] : memref<3x1x128xf32, #tpu.memory_space<vmem>>, vector<1x1x128xf32>
    %49 = vector.shape_cast %48 : vector<1x1x128xf32> to vector<1x128xf32>
    %50 = arith.addf %47, %49 : vector<1x128xf32>
    %51 = arith.negf %50 : vector<1x128xf32>
    %52 = math.exp %51 : vector<1x128xf32>
    %cst_50 = arith.constant 1.000000e+00 : f32
    %53 = vector.broadcast %cst_50 : f32 to vector<1x128xf32>
    %54 = arith.addf %53, %52 : vector<1x128xf32>
    %55 = arith.divf %53, %54 : vector<1x128xf32>
    %56 = vector.extract_strided_slice %55 {offsets = [0, 0], sizes = [1, 32], strides = [1, 1]} : vector<1x128xf32> to vector<1x32xf32>
    %57 = vector.extract_strided_slice %55 {offsets = [0, 32], sizes = [1, 32], strides = [1, 1]} : vector<1x128xf32> to vector<1x32xf32>
    %58 = vector.extract_strided_slice %55 {offsets = [0, 96], sizes = [1, 32], strides = [1, 1]} : vector<1x128xf32> to vector<1x32xf32>
    %59 = vector.extract_strided_slice %50 {offsets = [0, 64], sizes = [1, 32], strides = [1, 1]} : vector<1x128xf32> to vector<1x32xf32>
    %60 = math.tanh %59 : vector<1x32xf32>
    %61 = arith.mulf %57, %42 : vector<1x32xf32>
    %62 = arith.mulf %56, %60 : vector<1x32xf32>
    %63 = arith.addf %61, %62 : vector<1x32xf32>
    %64 = math.tanh %63 : vector<1x32xf32>
    %65 = arith.mulf %58, %64 : vector<1x32xf32>
    %c0_51 = arith.constant 0 : index
    %c64 = arith.constant 64 : index
    %66 = vector.load %arg7[%c0_51, %c64] : memref<1x256xf32, #tpu.memory_space<vmem>>, vector<1x32xf32>
    tpu.vector_store %arg7[%c0_51, %c64], %65 {strides = array<i32>} : memref<1x256xf32, #tpu.memory_space<vmem>>, vector<1x32xf32>,
    %c0_52 = arith.constant 0 : index
    %c96 = arith.constant 96 : index
    %67 = vector.load %arg7[%c0_52, %c96] : memref<1x256xf32, #tpu.memory_space<vmem>>, vector<1x32xf32>
    tpu.vector_store %arg7[%c0_52, %c96], %63 {strides = array<i32>} : memref<1x256xf32, #tpu.memory_space<vmem>>, vector<1x32xf32>,
    %c0_53 = arith.constant 0 : index
    %c0_54 = arith.constant 0 : index
    %68 = vector.load %arg8[%c0_53, %c0_54] : memref<1x384xf32, #tpu.memory_space<vmem>>, vector<1x32xf32>
    tpu.vector_store %arg8[%c0_53, %c0_54], %65 {strides = array<i32>} : memref<1x384xf32, #tpu.memory_space<vmem>>, vector<1x32xf32>,
    %c2 = arith.constant 2 : index
    %c0_55 = arith.constant 0 : index
    %c0_56 = arith.constant 0 : index
    %69 = vector.load %arg3[%c2, %c0_55, %c0_56] : memref<3x1x32xf32, #tpu.memory_space<vmem>>, vector<1x1x32xf32>
    %70 = vector.shape_cast %69 : vector<1x1x32xf32> to vector<1x32xf32>
    %c2_57 = arith.constant 2 : index
    %c0_58 = arith.constant 0 : index
    %c0_59 = arith.constant 0 : index
    %71 = vector.load %arg4[%c2_57, %c0_58, %c0_59] : memref<3x1x32xf32, #tpu.memory_space<vmem>>, vector<1x1x32xf32>
    %72 = vector.shape_cast %71 : vector<1x1x32xf32> to vector<1x32xf32>
    %c0_60 = arith.constant 0 : index
    %c256_61 = arith.constant 256 : index
    %73 = vector.load %arg8[%c0_60, %c256_61] : memref<1x384xf32, #tpu.memory_space<vmem>>, vector<1x32xf32>
    tpu.vector_store %arg8[%c0_60, %c256_61], %70 {strides = array<i32>} : memref<1x384xf32, #tpu.memory_space<vmem>>, vector<1x32xf32>,
    %c0_62 = arith.constant 0 : index
    %c0_63 = arith.constant 0 : index
    %74 = vector.load %arg8[%c0_62, %c0_63] : memref<1x384xf32, #tpu.memory_space<vmem>>, vector<1x384xf32>
    %c2_64 = arith.constant 2 : index
    %c0_65 = arith.constant 0 : index
    %c0_66 = arith.constant 0 : index
    %75 = vector.load %arg5[%c2_64, %c0_65, %c0_66] : memref<3x384x128xf32, #tpu.memory_space<vmem>>, vector<1x384x128xf32>
    %76 = vector.shape_cast %75 : vector<1x384x128xf32> to vector<384x128xf32>
    %cst_67 = arith.constant dense<0.000000e+00> : vector<1x128xf32>
    %77 = tpu.matmul %74, %76, %cst_67 {dimension_numbers = #tpu.dot_dimension_numbers<[1], [0], [0], [1], [0, 0, 1, 1], [], []>} : vector<1x384xf32>, vector<384x128xf32>, vector<1x128xf32> -> vector<1x128xf32>
    %c2_68 = arith.constant 2 : index
    %c0_69 = arith.constant 0 : index
    %c0_70 = arith.constant 0 : index
    %78 = vector.load %arg6[%c2_68, %c0_69, %c0_70] : memref<3x1x128xf32, #tpu.memory_space<vmem>>, vector<1x1x128xf32>
    %79 = vector.shape_cast %78 : vector<1x1x128xf32> to vector<1x128xf32>
    %80 = arith.addf %77, %79 : vector<1x128xf32>
    %81 = arith.negf %80 : vector<1x128xf32>
    %82 = math.exp %81 : vector<1x128xf32>
    %cst_71 = arith.constant 1.000000e+00 : f32
    %83 = vector.broadcast %cst_71 : f32 to vector<1x128xf32>
    %84 = arith.addf %83, %82 : vector<1x128xf32>
    %85 = arith.divf %83, %84 : vector<1x128xf32>
    %86 = vector.extract_strided_slice %85 {offsets = [0, 0], sizes = [1, 32], strides = [1, 1]} : vector<1x128xf32> to vector<1x32xf32>
    %87 = vector.extract_strided_slice %85 {offsets = [0, 32], sizes = [1, 32], strides = [1, 1]} : vector<1x128xf32> to vector<1x32xf32>
    %88 = vector.extract_strided_slice %85 {offsets = [0, 96], sizes = [1, 32], strides = [1, 1]} : vector<1x128xf32> to vector<1x32xf32>
    %89 = vector.extract_strided_slice %80 {offsets = [0, 64], sizes = [1, 32], strides = [1, 1]} : vector<1x128xf32> to vector<1x32xf32>
    %90 = math.tanh %89 : vector<1x32xf32>
    %91 = arith.mulf %87, %72 : vector<1x32xf32>
    %92 = arith.mulf %86, %90 : vector<1x32xf32>
    %93 = arith.addf %91, %92 : vector<1x32xf32>
    %94 = math.tanh %93 : vector<1x32xf32>
    %95 = arith.mulf %88, %94 : vector<1x32xf32>
    %c0_72 = arith.constant 0 : index
    %c128 = arith.constant 128 : index
    %96 = vector.load %arg7[%c0_72, %c128] : memref<1x256xf32, #tpu.memory_space<vmem>>, vector<1x32xf32>
    tpu.vector_store %arg7[%c0_72, %c128], %95 {strides = array<i32>} : memref<1x256xf32, #tpu.memory_space<vmem>>, vector<1x32xf32>,
    %c0_73 = arith.constant 0 : index
    %c160 = arith.constant 160 : index
    %97 = vector.load %arg7[%c0_73, %c160] : memref<1x256xf32, #tpu.memory_space<vmem>>, vector<1x32xf32>
    tpu.vector_store %arg7[%c0_73, %c160], %93 {strides = array<i32>} : memref<1x256xf32, #tpu.memory_space<vmem>>, vector<1x32xf32>,
    return
  }
  func.func @transform_0(%arg0: i32, %arg1: memref<1xi32, #tpu.memory_space<smem>>) -> (i32, i32, i32) {
    %c0 = arith.constant 0 : index
    %0 = memref.load %arg1[%c0] : memref<1xi32, #tpu.memory_space<smem>>
    %c0_i32 = arith.constant 0 : i32
    %c0_i32_0 = arith.constant 0 : i32
    %c0_i32_1 = arith.constant 0 : i32
    return %0, %c0_i32, %c0_i32_0 : i32, i32, i32
  }
  func.func @transform_1(%arg0: i32, %arg1: memref<1xi32, #tpu.memory_space<smem>>) -> (i32, i32, i32) {
    %c0_i32 = arith.constant 0 : i32
    %c0_i32_0 = arith.constant 0 : i32
    %c0_i32_1 = arith.constant 0 : i32
    %c0_i32_2 = arith.constant 0 : i32
    return %c0_i32, %c0_i32_0, %c0_i32_1 : i32, i32, i32
  }
  func.func @transform_2(%arg0: i32, %arg1: memref<1xi32, #tpu.memory_space<smem>>) -> (i32, i32, i32) {
    %c0_i32 = arith.constant 0 : i32
    %c0_i32_0 = arith.constant 0 : i32
    %c0_i32_1 = arith.constant 0 : i32
    %c0_i32_2 = arith.constant 0 : i32
    return %c0_i32, %c0_i32_0, %c0_i32_1 : i32, i32, i32
  }
  func.func @transform_3(%arg0: i32, %arg1: memref<1xi32, #tpu.memory_space<smem>>) -> (i32, i32, i32) {
    %c0_i32 = arith.constant 0 : i32
    %c0_i32_0 = arith.constant 0 : i32
    %c0_i32_1 = arith.constant 0 : i32
    %c0_i32_2 = arith.constant 0 : i32
    return %c0_i32, %c0_i32_0, %c0_i32_1 : i32, i32, i32
  }
  func.func @transform_4(%arg0: i32, %arg1: memref<1xi32, #tpu.memory_space<smem>>) -> (i32, i32, i32) {
    %c0_i32 = arith.constant 0 : i32
    %c0_i32_0 = arith.constant 0 : i32
    %c0_i32_1 = arith.constant 0 : i32
    %c0_i32_2 = arith.constant 0 : i32
    return %c0_i32, %c0_i32_0, %c0_i32_1 : i32, i32, i32
  }
  func.func @transform_5(%arg0: i32, %arg1: memref<1xi32, #tpu.memory_space<smem>>) -> (i32, i32) {
    %c0_i32 = arith.constant 0 : i32
    %c0_i32_0 = arith.constant 0 : i32
    %c0_i32_1 = arith.constant 0 : i32
    return %c0_i32, %c0_i32_0 : i32, i32
  }
}

</mosaic_0001>

<llo_original>
// kernel: squeeze.1
$region0: #{squeeze.1}
  %s0 = inlined_call_operand.vmem [shape: f32[192], index: 0, kind: input, shape index: {}]
  %s1 = inlined_call_operand.vmem [shape: f32[3,2,32], index: 1, kind: output, shape index: {}]
  $region1: #{squeeze.1} parent=0
    #allocation0 [shape = 'u8[12288]{0}', space=vmem, size = 0x3000, scoped, tag = 'scoped mem for output reshape']
    #allocation1 [shape = 'u8[4096]{0}', space=vmem, size = 0x1000, scoped, tag = 'scoped mem for input reshape']
    %s3 = ssub.s32 4, 1
    %v4 = vld [vmem:[%s0] sm:%s3]
    %5 = vst [vmem:[#allocation1] sm:%s3] %v4
    %v6 = vld [vmem:[#allocation1] sm:$0x3]
    %vm7 = vcmask 261120
    %8 = vst.msk [vmem:[#allocation0] ss:$16 sm:$0x3] %vm7, %v6
    %v9 = vld [vmem:[#allocation1] sm:$0x3]
    %10 = vrot.lane.b32.xlu0 %v9, 96
    %v11 = vpop.permute.xlu0 %10
    %vm12 = vcmask 261120
    %s13 = scalar_lea.vmem [#allocation0], 1
    %14 = vst.msk [vmem:[%s13] ss:$16 sm:$0x3] %vm12, %v11
    %v15 = vld [vmem:[#allocation1] sm:$0x1]
    %16 = vrot.lane.b32.xlu0 %v15, 64
    %v17 = vpop.permute.xlu0 %16
    %vm18 = vcmask 261120
    %s19 = scalar_lea.vmem [#allocation0], 8
    %20 = vst.msk [vmem:[%s19] sm:$0x1] %vm18, %v17
    %v21 = vld [vmem:[#allocation1] sm:$0x1]
    %22 = vrot.lane.b32.xlu0 %v21, 32
    %v23 = vpop.permute.xlu0 %22
    %vm24 = vcmask 261120
    %s25 = scalar_lea.vmem [#allocation0], 9
    %26 = vst.msk [vmem:[%s25] sm:$0x1] %vm24, %v23
    %s28 = ssub.s32 4, 1
    %v29 = vld [vmem:[#allocation0] sm:%s28]
    %s31 = ssub.s32 4, 1
    %32 = vst [vmem:[%s1] sm:%s31] %v29
    %s33 = scalar_lea.vmem [#allocation0], 8
    %v34 = vld [vmem:[%s33] sm:%s28]
    %s36 = ssub.s32 4, 1
    %s37 = scalar_lea.vmem %s1, 2
    %38 = vst [vmem:[%s37] sm:%s36] %v34
    %s39 = scalar_lea.vmem [#allocation0], 16
    %v40 = vld [vmem:[%s39] sm:%s28]
    %s42 = ssub.s32 4, 1
    %s43 = scalar_lea.vmem %s1, 4
    %44 = vst [vmem:[%s43] sm:%s42] %v40

// kernel: lstm_encoder_forward.1
$region0: #{lstm_encoder_forward.1}
  #allocation0 [shape = 'u32[]', space=smem, size = 0x4, offset = 0x4, fixed_abs, tag = 'smem constant byte address 0x4 - core index']
  #allocation1 [shape = 'u32[72,128]{1,0:T(1,128)}', space=vmem, size = 0x9000, scoped, tag = 'internal scratch']
  #allocation2 [shape = 'f32[1,384]{1,0:T(1,128)}', space=vmem, size = 0x600, scoped, tag = 'scratch operand']
  #allocation3 [shape = 's32[1]{0}', space=sflag, size = 0x4, scoped, tag = 'scoped memory for lstm_encoder_forward.1']
  #allocation4 [shape = 's32[1]{0:T(128)S(6)}', space=smem, size = 0x200, scoped, tag = 'prefetched SMEM operand 0']
  %s0 = inlined_call_operand.<no memory space> [shape: s32[1], index: 0, kind: input, shape index: {}]
  %s1 = inlined_call_operand.hbm [shape: f32[64,1,256], index: 1, kind: input, shape index: {}]
  %s2 = inlined_call_operand.vmem [shape: f32[3,1,32], index: 2, kind: input, shape index: {}]
  %s3 = inlined_call_operand.hbm [shape: f32[3,1,32], index: 3, kind: input, shape index: {}]
  %s4 = inlined_call_operand.hbm [shape: f32[3,384,128], index: 4, kind: input, shape index: {}]
  %s5 = inlined_call_operand.hbm [shape: f32[3,1,128], index: 5, kind: input, shape index: {}]
  %s6 = inlined_call_operand.vmem [shape: f32[1,256], index: 6, kind: output, shape index: {}]
  %s7 = sld [smem:[#allocation0]]
  $region46: #{lstm_encoder_forward.1} parent=0
    _
  %s9 = ssub.s32 1, %s7
  %s10 = scalar_select 0, %s9, %s7
  %11 = sst [smem:[#allocation4]] %s0
  $region1: #{lstm_encoder_forward.1} parent=0
    #allocation5 [shape = 'u8[1024]{0}', space=vmem, size = 0x400, scoped, tag = 'input window, operand 1, single buffered']
    #allocation6 [shape = 's32[1]{0}', space=sflag, size = 0x4, scoped, tag = 'scoped memory for lstm_encoder_forward.1']
    #allocation7 [shape = 'u8[1536]{0}', space=vmem, size = 0x800, scoped, tag = 'input window, operand 3, single buffered']
    #allocation8 [shape = 's32[1]{0}', space=sflag, size = 0x4, scoped, tag = 'scoped memory for lstm_encoder_forward.1']
    #allocation9 [shape = 'u8[589824]{0}', space=vmem, size = 0x90000, scoped, tag = 'input window, operand 4, single buffered']
    #allocation10 [shape = 'u8[1536]{0}', space=vmem, size = 0x800, scoped, tag = 'input window, operand 5, single buffered']
    #allocation11 [shape = 's32[1]{0}', space=sflag, size = 0x4, scoped, tag = 'scoped memory for lstm_encoder_forward.1']
    %12 = vsyncpa [#allocation6], 0
    %13 = vsyncpa [#allocation8], 0
    %14 = vsyncpa [#allocation11], 0
    // Predicated region
    $region2: #{lstm_encoder_forward.1} parent=1 // pred_check
      _
    $region3: #{lstm_encoder_forward.1} parent=1 // pred_check_branch
      %16 = sbr.rel (0) target = $region5
    $region4: #{lstm_encoder_forward.1} parent=1 // pred_region
      %s17 = sld [smem:[#allocation4]]
      %19 = vsyncadd [#allocation6], 0
      %s20 = smul.addr %s17, 2
      %s21 = scalar_lea.hbm %s1, %s20
      %s23 = sshll.u32 %s21, 4
      %s24 = int_to_ptr.hbm [resolvable:$true] %s23
      %s25 = sshll.u32 [#allocation5], 4
      %s26 = int_to_ptr.vmem [resolvable:$true] %s25
      %28 = dma.hbm_to_vmem [thread:$0]  %s24, 32, %s26, [#allocation6]
    $region5: #{lstm_encoder_forward.1} parent=1 // pred_fallthru
      _
    // Predicated region
    $region6: #{lstm_encoder_forward.1} parent=1 // pred_check
      _
    $region7: #{lstm_encoder_forward.1} parent=1 // pred_check_branch
      %30 = sbr.rel (0) target = $region9
    $region8: #{lstm_encoder_forward.1} parent=1 // pred_region
      _
    $region9: #{lstm_encoder_forward.1} parent=1 // pred_fallthru
      _
    // Predicated region
    $region10: #{lstm_encoder_forward.1} parent=1 // pred_check
      _
    $region11: #{lstm_encoder_forward.1} parent=1 // pred_check_branch
      %32 = sbr.rel (0) target = $region13
    $region12: #{lstm_encoder_forward.1} parent=1 // pred_region
      %34 = vsyncadd [#allocation8], 0
      %s35 = sshll.u32 %s3, 4
      %s36 = int_to_ptr.hbm [resolvable:$true] %s35
      %s37 = sshll.u32 [#allocation7], 4
      %s38 = int_to_ptr.vmem [resolvable:$true] %s37
      %43 = dma.hbm_to_vmem [thread:$0]  %s36, 48, %s38, [#allocation8], 16, 16, 1
    $region13: #{lstm_encoder_forward.1} parent=1 // pred_fallthru
      _
    // Predicated region
    $region14: #{lstm_encoder_forward.1} parent=1 // pred_check
      _
    $region15: #{lstm_encoder_forward.1} parent=1 // pred_check_branch
      %45 = sbr.rel (0) target = $region17
    $region16: #{lstm_encoder_forward.1} parent=1 // pred_region
      %47 = vsyncadd [#allocation8], 0
      %s48 = sshll.u32 %s4, 4
      %s49 = int_to_ptr.hbm [resolvable:$true] %s48
      %s50 = sshll.u32 [#allocation9], 4
      %s51 = int_to_ptr.vmem [resolvable:$true] %s50
      %56 = dma.hbm_to_vmem [thread:$0]  %s49, 18432, %s51, [#allocation8], 128, 128, 8
    $region17: #{lstm_encoder_forward.1} parent=1 // pred_fallthru
      _
    // Predicated region
    $region18: #{lstm_encoder_forward.1} parent=1 // pred_check
      _
    $region19: #{lstm_encoder_forward.1} parent=1 // pred_check_branch
      %58 = sbr.rel (0) target = $region21
    $region20: #{lstm_encoder_forward.1} parent=1 // pred_region
      %60 = vsyncadd [#allocation11], 0
      %s61 = sshll.u32 %s5, 4
      %s62 = int_to_ptr.hbm [resolvable:$true] %s61
      %s63 = sshll.u32 [#allocation10], 4
      %s64 = int_to_ptr.vmem [resolvable:$true] %s63
      %69 = dma.hbm_to_vmem [thread:$0]  %s62, 48, %s64, [#allocation11], 16, 16, 1
    $region21: #{lstm_encoder_forward.1} parent=1 // pred_fallthru
      _
    // Predicated region
    $region22: #{lstm_encoder_forward.1} parent=1 // pred_check
      _
    $region23: #{lstm_encoder_forward.1} parent=1 // pred_check_branch
      %71 = sbr.rel (0) target = $region25
    $region24: #{lstm_encoder_forward.1} parent=1 // pred_region
      %73 = dma.done [#allocation6], 32
    $region25: #{lstm_encoder_forward.1} parent=1 // pred_fallthru
      _
    // Predicated region
    $region26: #{lstm_encoder_forward.1} parent=1 // pred_check
      _
    $region27: #{lstm_encoder_forward.1} parent=1 // pred_check_branch
      %75 = sbr.rel (0) target = $region29
    $region28: #{lstm_encoder_forward.1} parent=1 // pred_region
      %77 = dma.done [#allocation8], 48
    $region29: #{lstm_encoder_forward.1} parent=1 // pred_fallthru
      _
    // Predicated region
    $region30: #{lstm_encoder_forward.1} parent=1 // pred_check
      _
    $region31: #{lstm_encoder_forward.1} parent=1 // pred_check_branch
      %79 = sbr.rel (0) target = $region33
    $region32: #{lstm_encoder_forward.1} parent=1 // pred_region
      %81 = dma.done [#allocation8], 18432
    $region33: #{lstm_encoder_forward.1} parent=1 // pred_fallthru
      _
    // Predicated region
    $region34: #{lstm_encoder_forward.1} parent=1 // pred_check
      _
    $region35: #{lstm_encoder_forward.1} parent=1 // pred_check_branch
      %83 = sbr.rel (0) target = $region37
    $region36: #{lstm_encoder_forward.1} parent=1 // pred_region
      %85 = dma.done [#allocation11], 48
    $region37: #{lstm_encoder_forward.1} parent=1 // pred_fallthru
      _
    %s86 = sld [smem:[#allocation4]]
    %v87 = vlaneseq
    %vm88 = vcmp.ge.s32.totalorder %v87, 0
    %vm89 = vcmp.lt.s32.totalorder %v87, 256
    %vm90 = vmand %vm88, %vm89
    %91 = vst.msk [vmem:[%s6] sm:$0x3] %vm90, 0.0
    %vm92 = vcmp.lt.s32.totalorder %v87, 384
    %vm93 = vmand %vm88, %vm92
    %94 = vst.msk [vmem:[#allocation2] sm:$0x7] %vm93, 0.0
    %v95 = vld [vmem:[#allocation5] sm:$0x3]
    %96 = vst.msk [vmem:[#allocation2] sm:$0x3] %vm90, %v95
    %v97 = vld [vmem:[%s2] sm:$0x1]
    %v98 = vld [vmem:[#allocation7] sm:$0x1]
    %vm99 = vcmp.lt.s32.totalorder %v87, 32
    %vm100 = vmand %vm88, %vm99
    %101 = vst.msk [vmem:[#allocation2 + $0x2] sm:$0x1] %vm100, %v97
    %v102 = vld [vmem:[#allocation2] sm:$0x7]
    %v103 = vld [vmem:[#allocation9] sm:$0xff]
    %v104 = vld [vmem:[#allocation9 + $0x8] sm:$0xff]
    %v105 = vld [vmem:[#allocation9 + $0x10] sm:$0xff]
    %v106 = vld [vmem:[#allocation9 + $0x18] sm:$0xff]
    %v107 = vld [vmem:[#allocation9 + $0x20] sm:$0xff]
    %v108 = vld [vmem:[#allocation9 + $0x28] sm:$0xff]
    %v109 = vld [vmem:[#allocation9 + $0x30] sm:$0xff]
    %v110 = vld [vmem:[#allocation9 + $0x38] sm:$0xff]
    %v111 = vld [vmem:[#allocation9 + $0x40] sm:$0xff]
    %v112 = vld [vmem:[#allocation9 + $0x48] sm:$0xff]
    %v113 = vld [vmem:[#allocation9 + $0x50] sm:$0xff]
    %v114 = vld [vmem:[#allocation9 + $0x58] sm:$0xff]
    %v115 = vld [vmem:[#allocation9 + $0x60] sm:$0xff]
    %v116 = vld [vmem:[#allocation9 + $0x68] sm:$0xff]
    %v117 = vld [vmem:[#allocation9 + $0x70] sm:$0xff]
    %v118 = vld [vmem:[#allocation9 + $0x78] sm:$0xff]
    %v119 = vld [vmem:[#allocation9 + $0x80] sm:$0xff]
    %v120 = vld [vmem:[#allocation9 + $0x88] sm:$0xff]
    %v121 = vld [vmem:[#allocation9 + $0x90] sm:$0xff]
    %v122 = vld [vmem:[#allocation9 + $0x98] sm:$0xff]
    %v123 = vld [vmem:[#allocation9 + $0xa0] sm:$0xff]
    %v124 = vld [vmem:[#allocation9 + $0xa8] sm:$0xff]
    %v125 = vld [vmem:[#allocation9 + $0xb0] sm:$0xff]
    %v126 = vld [vmem:[#allocation9 + $0xb8] sm:$0xff]
    %v127 = vld [vmem:[#allocation9 + $0xc0] sm:$0xff]
    %v128 = vld [vmem:[#allocation9 + $0xc8] sm:$0xff]
    %v129 = vld [vmem:[#allocation9 + $0xd0] sm:$0xff]
    %v130 = vld [vmem:[#allocation9 + $0xd8] sm:$0xff]
    %v131 = vld [vmem:[#allocation9 + $0xe0] sm:$0xff]
    %v132 = vld [vmem:[#allocation9 + $0xe8] sm:$0xff]
    %v133 = vld [vmem:[#allocation9 + $0xf0] sm:$0xff]
    %v134 = vld [vmem:[#allocation9 + $0xf8] sm:$0xff]
    %v135 = vld [vmem:[#allocation9 + $0x100] sm:$0xff]
    %v136 = vld [vmem:[#allocation9 + $0x108] sm:$0xff]
    %v137 = vld [vmem:[#allocation9 + $0x110] sm:$0xff]
    %v138 = vld [vmem:[#allocation9 + $0x118] sm:$0xff]
    %v139 = vld [vmem:[#allocation9 + $0x120] sm:$0xff]
    %v140 = vld [vmem:[#allocation9 + $0x128] sm:$0xff]
    %v141 = vld [vmem:[#allocation9 + $0x130] sm:$0xff]
    %v142 = vld [vmem:[#allocation9 + $0x138] sm:$0xff]
    %v143 = vld [vmem:[#allocation9 + $0x140] sm:$0xff]
    %v144 = vld [vmem:[#allocation9 + $0x148] sm:$0xff]
    %v145 = vld [vmem:[#allocation9 + $0x150] sm:$0xff]
    %v146 = vld [vmem:[#allocation9 + $0x158] sm:$0xff]
    %v147 = vld [vmem:[#allocation9 + $0x160] sm:$0xff]
    %v148 = vld [vmem:[#allocation9 + $0x168] sm:$0xff]
    %v149 = vld [vmem:[#allocation9 + $0x170] sm:$0xff]
    %v150 = vld [vmem:[#allocation9 + $0x178] sm:$0xff]
    %v151 = vld [vmem:[#allocation10] sm:$0x1]
    %v153 = vperm.slane %v102, 0
    %v154 = vperm.slane %v102, 1
    %v155 = vperm.slane %v102, 2
    %159 = vmatpush.msra.mxu0 %v118
    %160 = vmatpush.msra.mxu0 %v117
    %161 = vmatpush.msra.mxu0 %v116
    %162 = vmatpush.msra.mxu0 %v115
    %163 = vmatpush.msra.mxu0 %v114
    %164 = vmatpush.msra.mxu0 %v113
    %165 = vmatpush.msra.mxu0 %v112
    %166 = vmatpush.msra.mxu0 %v111
    %167 = vmatpush.msra.mxu0 %v110
    %168 = vmatpush.msra.mxu0 %v109
    %169 = vmatpush.msra.mxu0 %v108
    %170 = vmatpush.msra.mxu0 %v107
    %171 = vmatpush.msra.mxu0 %v106
    %172 = vmatpush.msra.mxu0 %v105
    %173 = vmatpush.msra.mxu0 %v104
    %174 = vmatpush.msra.mxu0 %v103
    %175 = vmatmul.f32.gmra.mxu0 %v153
    %v176 = vpop.f32.mrf.mxu0
    %v177 = vadd.f32 %v151, %v176
    %178 = vdwg.mxu0
    %179 = vmatpush.msra.mxu0 %v134
    %180 = vmatpush.msra.mxu0 %v133
    %181 = vmatpush.msra.mxu0 %v132
    %182 = vmatpush.msra.mxu0 %v131
    %183 = vmatpush.msra.mxu0 %v130
    %184 = vmatpush.msra.mxu0 %v129
    %185 = vmatpush.msra.mxu0 %v128
    %186 = vmatpush.msra.mxu0 %v127
    %187 = vmatpush.msra.mxu0 %v126
    %188 = vmatpush.msra.mxu0 %v125
    %189 = vmatpush.msra.mxu0 %v124
    %190 = vmatpush.msra.mxu0 %v123
    %191 = vmatpush.msra.mxu0 %v122
    %192 = vmatpush.msra.mxu0 %v121
    %193 = vmatpush.msra.mxu0 %v120
    %194 = vmatpush.msra.mxu0 %v119
    %195 = vmatmul.f32.gmra.mxu0 %v154
    %v196 = vpop.f32.mrf.mxu0
    %v197 = vadd.f32 %v177, %v196
    %198 = vdwg.mxu0
    %199 = vmatpush.msra.mxu0 %v150
    %200 = vmatpush.msra.mxu0 %v149
    %201 = vmatpush.msra.mxu0 %v148
    %202 = vmatpush.msra.mxu0 %v147
    %203 = vmatpush.msra.mxu0 %v146
    %204 = vmatpush.msra.mxu0 %v145
    %205 = vmatpush.msra.mxu0 %v144
    %206 = vmatpush.msra.mxu0 %v143
    %207 = vmatpush.msra.mxu0 %v142
    %208 = vmatpush.msra.mxu0 %v141
    %209 = vmatpush.msra.mxu0 %v140
    %210 = vmatpush.msra.mxu0 %v139
    %211 = vmatpush.msra.mxu0 %v138
    %212 = vmatpush.msra.mxu0 %v137
    %213 = vmatpush.msra.mxu0 %v136
    %214 = vmatpush.msra.mxu0 %v135
    %215 = vmatmul.f32.gmra.mxu0 %v155
    %v216 = vpop.f32.mrf.mxu0
    %v217 = vadd.f32 %v197, %v216
    %218 = vdwg.mxu0
    %v219 = vxor.u32 %v217, 2147483648
    %v220 = vmul.f32 %v219, 1.442695
    %v221 = vpow.pop %v220
    %v222 = vadd.f32 %v221, 1.0
    %v223 = vrcp.pop %v222
    %v224 = vmul.f32 %v222, %v223
    %v225 = vsub.f32 1.0, %v224
    %v226 = vmul.f32 %v223, %v225
    %v227 = vadd.f32 %v223, %v226
    %vm228 = vweird.f32 %v222
    %vm229 = vweird.f32 %v223
    %vm230 = vmor %vm228, %vm229
    %v231 = vsel %vm230, %v223, %v227
    %v232 = vand.u32 2147483647, %v222
    %vm233 = vcmp.eq.f32.partialorder %v232, 8.507059e+37
    %v234 = vand.u32 %v222, 2147483648
    %v235 = vor.u32 1.1754944e-38, %v234
    %v236 = vsel %vm233, %v235, %v231
    %v237 = vmul.f32 1.0, %v236
    %v238 = vtanh.pop %v217
    %v240 = vperm.slane %v98, 0
    %241 = vrot.lane.b32.xlu0 %v240, 32
    %v242 = vpop.permute.xlu0 %241
    %v244 = vmul.f32 %v237, %v242
    %246 = vrot.lane.b32.xlu0 %v238, 64
    %v247 = vpop.permute.xlu0 %246
    %v249 = vmul.f32 %v237, %v247
    %251 = vrot.lane.b32.xlu0 %v249, 32
    %v252 = vpop.permute.xlu0 %251
    %v254 = vadd.f32 %v244, %v252
    %v255 = vtanh.pop %v254
    %257 = vrot.lane.b32.xlu0 %v255, 64
    %v258 = vpop.permute.xlu0 %257
    %v260 = vmul.f32 %v237, %v258
    %262 = vrot.lane.b32.xlu0 %v260, 32
    %v263 = vpop.permute.xlu0 %262
    %265 = vst.msk [vmem:[%s6] sm:$0x1] %vm100, %v263
    %vm266 = vcmp.ge.s32.totalorder %v87, 32
    %vm267 = vcmp.lt.s32.totalorder %v87, 64
    %vm268 = vmand %vm266, %vm267
    %269 = vst.msk [vmem:[%s6] sm:$0x1] %vm268, %v254
    %270 = vst.msk [vmem:[#allocation2] sm:$0x1] %vm100, %v263
    %vm271 = vmand %vm266, %vm89
    %272 = vst.msk [vmem:[#allocation2] sm:$0x3] %vm271, 0.0
    %s273 = scalar_lea.vmem %s2, 1
    %v274 = vld [vmem:[%s273] sm:$0x1]
    %s275 = scalar_lea.vmem [#allocation7], 1
    %v276 = vld [vmem:[%s275] sm:$0x1]
    %277 = vst.msk [vmem:[#allocation2 + $0x2] sm:$0x1] %vm100, %v274
    %v278 = vld [vmem:[#allocation2] sm:$0x7]
    %s279 = scalar_lea.vmem [#allocation9], 384
    %v280 = vld [vmem:[%s279] sm:$0xff]
    %v281 = vld [vmem:[%s279 + $0x8] sm:$0xff]
    %v282 = vld [vmem:[%s279 + $0x10] sm:$0xff]
    %v283 = vld [vmem:[%s279 + $0x18] sm:$0xff]
    %v284 = vld [vmem:[%s279 + $0x20] sm:$0xff]
    %v285 = vld [vmem:[%s279 + $0x28] sm:$0xff]
    %v286 = vld [vmem:[%s279 + $0x30] sm:$0xff]
    %v287 = vld [vmem:[%s279 + $0x38] sm:$0xff]
    %v288 = vld [vmem:[%s279 + $0x40] sm:$0xff]
    %v289 = vld [vmem:[%s279 + $0x48] sm:$0xff]
    %v290 = vld [vmem:[%s279 + $0x50] sm:$0xff]
    %v291 = vld [vmem:[%s279 + $0x58] sm:$0xff]
    %v292 = vld [vmem:[%s279 + $0x60] sm:$0xff]
    %v293 = vld [vmem:[%s279 + $0x68] sm:$0xff]
    %v294 = vld [vmem:[%s279 + $0x70] sm:$0xff]
    %v295 = vld [vmem:[%s279 + $0x78] sm:$0xff]
    %v296 = vld [vmem:[%s279 + $0x80] sm:$0xff]
    %v297 = vld [vmem:[%s279 + $0x88] sm:$0xff]
    %v298 = vld [vmem:[%s279 + $0x90] sm:$0xff]
    %v299 = vld [vmem:[%s279 + $0x98] sm:$0xff]
    %v300 = vld [vmem:[%s279 + $0xa0] sm:$0xff]
    %v301 = vld [vmem:[%s279 + $0xa8] sm:$0xff]
    %v302 = vld [vmem:[%s279 + $0xb0] sm:$0xff]
    %v303 = vld [vmem:[%s279 + $0xb8] sm:$0xff]
    %v304 = vld [vmem:[%s279 + $0xc0] sm:$0xff]
    %v305 = vld [vmem:[%s279 + $0xc8] sm:$0xff]
    %v306 = vld [vmem:[%s279 + $0xd0] sm:$0xff]
    %v307 = vld [vmem:[%s279 + $0xd8] sm:$0xff]
    %v308 = vld [vmem:[%s279 + $0xe0] sm:$0xff]
    %v309 = vld [vmem:[%s279 + $0xe8] sm:$0xff]
    %v310 = vld [vmem:[%s279 + $0xf0] sm:$0xff]
    %v311 = vld [vmem:[%s279 + $0xf8] sm:$0xff]
    %v312 = vld [vmem:[%s279 + $0x100] sm:$0xff]
    %v313 = vld [vmem:[%s279 + $0x108] sm:$0xff]
    %v314 = vld [vmem:[%s279 + $0x110] sm:$0xff]
    %v315 = vld [vmem:[%s279 + $0x118] sm:$0xff]
    %v316 = vld [vmem:[%s279 + $0x120] sm:$0xff]
    %v317 = vld [vmem:[%s279 + $0x128] sm:$0xff]
    %v318 = vld [vmem:[%s279 + $0x130] sm:$0xff]
    %v319 = vld [vmem:[%s279 + $0x138] sm:$0xff]
    %v320 = vld [vmem:[%s279 + $0x140] sm:$0xff]
    %v321 = vld [vmem:[%s279 + $0x148] sm:$0xff]
    %v322 = vld [vmem:[%s279 + $0x150] sm:$0xff]
    %v323 = vld [vmem:[%s279 + $0x158] sm:$0xff]
    %v324 = vld [vmem:[%s279 + $0x160] sm:$0xff]
    %v325 = vld [vmem:[%s279 + $0x168] sm:$0xff]
    %v326 = vld [vmem:[%s279 + $0x170] sm:$0xff]
    %v327 = vld [vmem:[%s279 + $0x178] sm:$0xff]
    %s328 = scalar_lea.vmem [#allocation10], 1
    %v329 = vld [vmem:[%s328] sm:$0x1]
    %v331 = vperm.slane %v278, 0
    %v332 = vperm.slane %v278, 1
    %v333 = vperm.slane %v278, 2
    %337 = vmatpush.msra.mxu0 %v295
    %338 = vmatpush.msra.mxu0 %v294
    %339 = vmatpush.msra.mxu0 %v293
    %340 = vmatpush.msra.mxu0 %v292
    %341 = vmatpush.msra.mxu0 %v291
    %342 = vmatpush.msra.mxu0 %v290
    %343 = vmatpush.msra.mxu0 %v289
    %344 = vmatpush.msra.mxu0 %v288
    %345 = vmatpush.msra.mxu0 %v287
    %346 = vmatpush.msra.mxu0 %v286
    %347 = vmatpush.msra.mxu0 %v285
    %348 = vmatpush.msra.mxu0 %v284
    %349 = vmatpush.msra.mxu0 %v283
    %350 = vmatpush.msra.mxu0 %v282
    %351 = vmatpush.msra.mxu0 %v281
    %352 = vmatpush.msra.mxu0 %v280
    %353 = vmatmul.f32.gmra.mxu0 %v331
    %v354 = vpop.f32.mrf.mxu0
    %v355 = vadd.f32 %v329, %v354
    %356 = vdwg.mxu0
    %357 = vmatpush.msra.mxu0 %v311
    %358 = vmatpush.msra.mxu0 %v310
    %359 = vmatpush.msra.mxu0 %v309
    %360 = vmatpush.msra.mxu0 %v308
    %361 = vmatpush.msra.mxu0 %v307
    %362 = vmatpush.msra.mxu0 %v306
    %363 = vmatpush.msra.mxu0 %v305
    %364 = vmatpush.msra.mxu0 %v304
    %365 = vmatpush.msra.mxu0 %v303
    %366 = vmatpush.msra.mxu0 %v302
    %367 = vmatpush.msra.mxu0 %v301
    %368 = vmatpush.msra.mxu0 %v300
    %369 = vmatpush.msra.mxu0 %v299
    %370 = vmatpush.msra.mxu0 %v298
    %371 = vmatpush.msra.mxu0 %v297
    %372 = vmatpush.msra.mxu0 %v296
    %373 = vmatmul.f32.gmra.mxu0 %v332
    %v374 = vpop.f32.mrf.mxu0
    %v375 = vadd.f32 %v355, %v374
    %376 = vdwg.mxu0
    %377 = vmatpush.msra.mxu0 %v327
    %378 = vmatpush.msra.mxu0 %v326
    %379 = vmatpush.msra.mxu0 %v325
    %380 = vmatpush.msra.mxu0 %v324
    %381 = vmatpush.msra.mxu0 %v323
    %382 = vmatpush.msra.mxu0 %v322
    %383 = vmatpush.msra.mxu0 %v321
    %384 = vmatpush.msra.mxu0 %v320
    %385 = vmatpush.msra.mxu0 %v319
    %386 = vmatpush.msra.mxu0 %v318
    %387 = vmatpush.msra.mxu0 %v317
    %388 = vmatpush.msra.mxu0 %v316
    %389 = vmatpush.msra.mxu0 %v315
    %390 = vmatpush.msra.mxu0 %v314
    %391 = vmatpush.msra.mxu0 %v313
    %392 = vmatpush.msra.mxu0 %v312
    %393 = vmatmul.f32.gmra.mxu0 %v333
    %v394 = vpop.f32.mrf.mxu0
    %v395 = vadd.f32 %v375, %v394
    %396 = vdwg.mxu0
    %v397 = vxor.u32 %v395, 2147483648
    %v398 = vmul.f32 %v397, 1.442695
    %v399 = vpow.pop %v398
    %v400 = vadd.f32 %v399, 1.0
    %v401 = vrcp.pop %v400
    %v402 = vmul.f32 %v400, %v401
    %v403 = vsub.f32 1.0, %v402
    %v404 = vmul.f32 %v401, %v403
    %v405 = vadd.f32 %v401, %v404
    %vm406 = vweird.f32 %v400
    %vm407 = vweird.f32 %v401
    %vm408 = vmor %vm406, %vm407
    %v409 = vsel %vm408, %v401, %v405
    %v410 = vand.u32 2147483647, %v400
    %vm411 = vcmp.eq.f32.partialorder %v410, 8.507059e+37
    %v412 = vand.u32 %v400, 2147483648
    %v413 = vor.u32 1.1754944e-38, %v412
    %v414 = vsel %vm411, %v413, %v409
    %v415 = vmul.f32 1.0, %v414
    %v416 = vtanh.pop %v395
    %v418 = vperm.slane %v276, 0
    %419 = vrot.lane.b32.xlu0 %v418, 32
    %v420 = vpop.permute.xlu0 %419
    %v422 = vmul.f32 %v415, %v420
    %424 = vrot.lane.b32.xlu0 %v416, 64
    %v425 = vpop.permute.xlu0 %424
    %v427 = vmul.f32 %v415, %v425
    %429 = vrot.lane.b32.xlu0 %v427, 32
    %v430 = vpop.permute.xlu0 %429
    %v432 = vadd.f32 %v422, %v430
    %v433 = vtanh.pop %v432
    %435 = vrot.lane.b32.xlu0 %v433, 64
    %v436 = vpop.permute.xlu0 %435
    %v438 = vmul.f32 %v415, %v436
    %440 = vrot.lane.b32.xlu0 %v438, 96
    %v441 = vpop.permute.xlu0 %440
    %vm443 = vcmp.ge.s32.totalorder %v87, 64
    %vm444 = vcmp.lt.s32.totalorder %v87, 96
    %vm445 = vmand %vm443, %vm444
    %446 = vst.msk [vmem:[%s6] sm:$0x1] %vm445, %v441
    %448 = vrot.lane.b32.xlu0 %v432, 64
    %v449 = vpop.permute.xlu0 %448
    %vm451 = vcmp.ge.s32.totalorder %v87, 96
    %vm452 = vcmp.lt.s32.totalorder %v87, 128
    %vm453 = vmand %vm451, %vm452
    %454 = vst.msk [vmem:[%s6] sm:$0x1] %vm453, %v449
    %455 = vrot.lane.b32.xlu0 %v438, 32
    %v456 = vpop.permute.xlu0 %455
    %458 = vst.msk [vmem:[#allocation2] sm:$0x1] %vm100, %v456
    %s459 = scalar_lea.vmem %s2, 2
    %v460 = vld [vmem:[%s459] sm:$0x1]
    %s461 = scalar_lea.vmem [#allocation7], 2
    %v462 = vld [vmem:[%s461] sm:$0x1]
    %463 = vst.msk [vmem:[#allocation2 + $0x2] sm:$0x1] %vm100, %v460
    %v464 = vld [vmem:[#allocation2] sm:$0x7]
    %s465 = scalar_lea.vmem [#allocation9], 768
    %v466 = vld [vmem:[%s465] sm:$0xff]
    %v467 = vld [vmem:[%s465 + $0x8] sm:$0xff]
    %v468 = vld [vmem:[%s465 + $0x10] sm:$0xff]
    %v469 = vld [vmem:[%s465 + $0x18] sm:$0xff]
    %v470 = vld [vmem:[%s465 + $0x20] sm:$0xff]
    %v471 = vld [vmem:[%s465 + $0x28] sm:$0xff]
    %v472 = vld [vmem:[%s465 + $0x30] sm:$0xff]
    %v473 = vld [vmem:[%s465 + $0x38] sm:$0xff]
    %v474 = vld [vmem:[%s465 + $0x40] sm:$0xff]
    %v475 = vld [vmem:[%s465 + $0x48] sm:$0xff]
    %v476 = vld [vmem:[%s465 + $0x50] sm:$0xff]
    %v477 = vld [vmem:[%s465 + $0x58] sm:$0xff]
    %v478 = vld [vmem:[%s465 + $0x60] sm:$0xff]
    %v479 = vld [vmem:[%s465 + $0x68] sm:$0xff]
    %v480 = vld [vmem:[%s465 + $0x70] sm:$0xff]
    %v481 = vld [vmem:[%s465 + $0x78] sm:$0xff]
    %v482 = vld [vmem:[%s465 + $0x80] sm:$0xff]
    %v483 = vld [vmem:[%s465 + $0x88] sm:$0xff]
    %v484 = vld [vmem:[%s465 + $0x90] sm:$0xff]
    %v485 = vld [vmem:[%s465 + $0x98] sm:$0xff]
    %v486 = vld [vmem:[%s465 + $0xa0] sm:$0xff]
    %v487 = vld [vmem:[%s465 + $0xa8] sm:$0xff]
    %v488 = vld [vmem:[%s465 + $0xb0] sm:$0xff]
    %v489 = vld [vmem:[%s465 + $0xb8] sm:$0xff]
    %v490 = vld [vmem:[%s465 + $0xc0] sm:$0xff]
    %v491 = vld [vmem:[%s465 + $0xc8] sm:$0xff]
    %v492 = vld [vmem:[%s465 + $0xd0] sm:$0xff]
    %v493 = vld [vmem:[%s465 + $0xd8] sm:$0xff]
    %v494 = vld [vmem:[%s465 + $0xe0] sm:$0xff]
    %v495 = vld [vmem:[%s465 + $0xe8] sm:$0xff]
    %v496 = vld [vmem:[%s465 + $0xf0] sm:$0xff]
    %v497 = vld [vmem:[%s465 + $0xf8] sm:$0xff]
    %v498 = vld [vmem:[%s465 + $0x100] sm:$0xff]
    %v499 = vld [vmem:[%s465 + $0x108] sm:$0xff]
    %v500 = vld [vmem:[%s465 + $0x110] sm:$0xff]
    %v501 = vld [vmem:[%s465 + $0x118] sm:$0xff]
    %v502 = vld [vmem:[%s465 + $0x120] sm:$0xff]
    %v503 = vld [vmem:[%s465 + $0x128] sm:$0xff]
    %v504 = vld [vmem:[%s465 + $0x130] sm:$0xff]
    %v505 = vld [vmem:[%s465 + $0x138] sm:$0xff]
    %v506 = vld [vmem:[%s465 + $0x140] sm:$0xff]
    %v507 = vld [vmem:[%s465 + $0x148] sm:$0xff]
    %v508 = vld [vmem:[%s465 + $0x150] sm:$0xff]
    %v509 = vld [vmem:[%s465 + $0x158] sm:$0xff]
    %v510 = vld [vmem:[%s465 + $0x160] sm:$0xff]
    %v511 = vld [vmem:[%s465 + $0x168] sm:$0xff]
    %v512 = vld [vmem:[%s465 + $0x170] sm:$0xff]
    %v513 = vld [vmem:[%s465 + $0x178] sm:$0xff]
    %s514 = scalar_lea.vmem [#allocation10], 2
    %v515 = vld [vmem:[%s514] sm:$0x1]
    %v517 = vperm.slane %v464, 0
    %v518 = vperm.slane %v464, 1
    %v519 = vperm.slane %v464, 2
    %523 = vmatpush.msra.mxu0 %v481
    %524 = vmatpush.msra.mxu0 %v480
    %525 = vmatpush.msra.mxu0 %v479
    %526 = vmatpush.msra.mxu0 %v478
    %527 = vmatpush.msra.mxu0 %v477
    %528 = vmatpush.msra.mxu0 %v476
    %529 = vmatpush.msra.mxu0 %v475
    %530 = vmatpush.msra.mxu0 %v474
    %531 = vmatpush.msra.mxu0 %v473
    %532 = vmatpush.msra.mxu0 %v472
    %533 = vmatpush.msra.mxu0 %v471
    %534 = vmatpush.msra.mxu0 %v470
    %535 = vmatpush.msra.mxu0 %v469
    %536 = vmatpush.msra.mxu0 %v468
    %537 = vmatpush.msra.mxu0 %v467
    %538 = vmatpush.msra.mxu0 %v466
    %539 = vmatmul.f32.gmra.mxu0 %v517
    %v540 = vpop.f32.mrf.mxu0
    %v541 = vadd.f32 %v515, %v540
    %542 = vdwg.mxu0
    %543 = vmatpush.msra.mxu0 %v497
    %544 = vmatpush.msra.mxu0 %v496
    %545 = vmatpush.msra.mxu0 %v495
    %546 = vmatpush.msra.mxu0 %v494
    %547 = vmatpush.msra.mxu0 %v493
    %548 = vmatpush.msra.mxu0 %v492
    %549 = vmatpush.msra.mxu0 %v491
    %550 = vmatpush.msra.mxu0 %v490
    %551 = vmatpush.msra.mxu0 %v489
    %552 = vmatpush.msra.mxu0 %v488
    %553 = vmatpush.msra.mxu0 %v487
    %554 = vmatpush.msra.mxu0 %v486
    %555 = vmatpush.msra.mxu0 %v485
    %556 = vmatpush.msra.mxu0 %v484
    %557 = vmatpush.msra.mxu0 %v483
    %558 = vmatpush.msra.mxu0 %v482
    %559 = vmatmul.f32.gmra.mxu0 %v518
    %v560 = vpop.f32.mrf.mxu0
    %v561 = vadd.f32 %v541, %v560
    %562 = vdwg.mxu0
    %563 = vmatpush.msra.mxu0 %v513
    %564 = vmatpush.msra.mxu0 %v512
    %565 = vmatpush.msra.mxu0 %v511
    %566 = vmatpush.msra.mxu0 %v510
    %567 = vmatpush.msra.mxu0 %v509
    %568 = vmatpush.msra.mxu0 %v508
    %569 = vmatpush.msra.mxu0 %v507
    %570 = vmatpush.msra.mxu0 %v506
    %571 = vmatpush.msra.mxu0 %v505
    %572 = vmatpush.msra.mxu0 %v504
    %573 = vmatpush.msra.mxu0 %v503
    %574 = vmatpush.msra.mxu0 %v502
    %575 = vmatpush.msra.mxu0 %v501
    %576 = vmatpush.msra.mxu0 %v500
    %577 = vmatpush.msra.mxu0 %v499
    %578 = vmatpush.msra.mxu0 %v498
    %579 = vmatmul.f32.gmra.mxu0 %v519
    %v580 = vpop.f32.mrf.mxu0
    %v581 = vadd.f32 %v561, %v580
    %582 = vdwg.mxu0
    %v583 = vxor.u32 %v581, 2147483648
    %v584 = vmul.f32 %v583, 1.442695
    %v585 = vpow.pop %v584
    %v586 = vadd.f32 %v585, 1.0
    %v587 = vrcp.pop %v586
    %v588 = vmul.f32 %v586, %v587
    %v589 = vsub.f32 1.0, %v588
    %v590 = vmul.f32 %v587, %v589
    %v591 = vadd.f32 %v587, %v590
    %vm592 = vweird.f32 %v586
    %vm593 = vweird.f32 %v587
    %vm594 = vmor %vm592, %vm593
    %v595 = vsel %vm594, %v587, %v591
    %v596 = vand.u32 2147483647, %v586
    %vm597 = vcmp.eq.f32.partialorder %v596, 8.507059e+37
    %v598 = vand.u32 %v586, 2147483648
    %v599 = vor.u32 1.1754944e-38, %v598
    %v600 = vsel %vm597, %v599, %v595
    %v601 = vmul.f32 1.0, %v600
    %v602 = vtanh.pop %v581
    %v604 = vperm.slane %v462, 0
    %605 = vrot.lane.b32.xlu0 %v604, 32
    %v606 = vpop.permute.xlu0 %605
    %v608 = vmul.f32 %v601, %v606
    %610 = vrot.lane.b32.xlu0 %v602, 64
    %v611 = vpop.permute.xlu0 %610
    %v613 = vmul.f32 %v601, %v611
    %615 = vrot.lane.b32.xlu0 %v613, 32
    %v616 = vpop.permute.xlu0 %615
    %v618 = vadd.f32 %v608, %v616
    %v619 = vtanh.pop %v618
    %621 = vrot.lane.b32.xlu0 %v619, 64
    %v622 = vpop.permute.xlu0 %621
    %v624 = vmul.f32 %v601, %v622
    %626 = vrot.lane.b32.xlu0 %v624, 32
    %v627 = vpop.permute.xlu0 %626
    %629 = vst.msk [vmem:[%s6 + $0x1] sm:$0x1] %vm100, %v627
    %630 = vst.msk [vmem:[%s6 + $0x1] sm:$0x1] %vm268, %v618
    // Predicated region
    $region38: #{lstm_encoder_forward.1} parent=1 // pred_check
      _
    $region39: #{lstm_encoder_forward.1} parent=1 // pred_check_branch
      %632 = sbr.rel (0) target = $region41
    $region40: #{lstm_encoder_forward.1} parent=1 // pred_region
      _
    $region41: #{lstm_encoder_forward.1} parent=1 // pred_fallthru
      _
    // Predicated region
    $region42: #{lstm_encoder_forward.1} parent=1 // pred_check
      _
    $region43: #{lstm_encoder_forward.1} parent=1 // pred_check_branch
      %634 = sbr.rel (0) target = $region45
    $region44: #{lstm_encoder_forward.1} parent=1 // pred_region
      _
    $region45: #{lstm_encoder_forward.1} parent=1 // pred_fallthru
      _
    %635 = vsyncpa [#allocation6], 1
    %636 = vsyncpa [#allocation8], 1
    %637 = vsyncpa [#allocation11], 1

</llo_original>
